<compile_context>
chip_gen: v7x
topology: tpu7x:2x2x1
jax: 0.10.0
libtpu: 0.0.40
codegen_flags: <defaults>
</compile_context>

<pallas_src>
import jax
import jax.numpy as jnp
from jax import lax
from jax.experimental import pallas as pl
from jax.experimental.pallas import tpu as pltpu


def linear_sigmoid_kernel(x_ref, w_ref, b_ref, o_ref):
    """sigmoid(x @ w.T + b), computed transposed so the batch axis is lane-dense.

    x_ref: (B, IN)   w_ref: (OUT, IN)   b_ref: (OUT, 1)   o_ref: (OUT, B)
    """
    x = x_ref[...]
    w = w_ref[...]
    # Contract the IN axis of both operands: (OUT, IN) . (B, IN) -> (OUT, B).
    # No in-kernel transpose of the weight tile; the MXU consumes the
    # contraction dim from the native [OUT, IN] layout, and the result is
    # lane-dense along the batch axis.
    y = lax.dot_general(
        w, x,
        dimension_numbers=(((1,), (1,)), ((), ())),
        preferred_element_type=jnp.float32,
    )
    y = y + b_ref[...]  # (OUT, 1) broadcasts across the lane (batch) axis
    # sigmoid(y) = 0.5 * tanh(0.5 * y) + 0.5  -> single EUP op, no VPU divide.
    o_ref[...] = (0.5 * jnp.tanh(0.5 * y) + 0.5).astype(o_ref.dtype)


def linear_sigmoid(x, w, b):
    """torch.nn.Linear + Sigmoid forward. x:[B,IN], w:[OUT,IN], b:[OUT] -> [B,OUT]."""
    B, IN = x.shape
    OUT = w.shape[0]
    b2d = b.reshape(OUT, 1)
    # Single-shot call (no grid): whole problem is VMEM-resident at these sizes.
    out_t = pl.pallas_call(
        linear_sigmoid_kernel,
        out_shape=jax.ShapeDtypeStruct((OUT, B), x.dtype),
        in_specs=[
            pl.BlockSpec(memory_space=pltpu.MemorySpace.VMEM),
            pl.BlockSpec(memory_space=pltpu.MemorySpace.VMEM),
            pl.BlockSpec(memory_space=pltpu.MemorySpace.VMEM),
        ],
        out_specs=pl.BlockSpec(memory_space=pltpu.MemorySpace.VMEM),
    )(x, w, b2d)
    # Host-side layout plumbing back to the nn.Linear convention [B, OUT].
    return out_t.T


if __name__ == "__main__":
    key = jax.random.PRNGKey(0)
    kx, kw, kb = jax.random.split(key, 3)

    B, IN, OUT = 8, 10, 1

    # Deterministic init mimicking nn.Linear default U(-1/sqrt(IN), 1/sqrt(IN))
    bound = 1.0 / jnp.sqrt(jnp.float32(IN))
    weight = jax.random.uniform(kw, (OUT, IN), jnp.float32, -bound, bound)
    bias = jax.random.uniform(kb, (OUT,), jnp.float32, -bound, bound)
    x = jax.random.normal(kx, (B, IN), jnp.float32)

    out = jax.block_until_ready(linear_sigmoid(x, weight, bias))

    # Reference check in plain JAX
    ref = jax.nn.sigmoid(x @ weight.T + bias)
    assert out.shape == (B, OUT)
    assert jnp.allclose(out, ref, atol=1e-5), "mismatch vs reference"

    print("KERNEL_OK")
</pallas_src>

<mosaic_0001>
module attributes {stable_mosaic.version = 11 : i64} {
  func.func @linear_sigmoid_kernel(%arg0: memref<8x10xf32, #tpu.memory_space<vmem>>, %arg1: memref<1x10xf32, #tpu.memory_space<vmem>>, %arg2: memref<1x1xf32, #tpu.memory_space<vmem>>, %arg3: memref<1x8xf32, #tpu.memory_space<vmem>>) attributes {dimension_semantics = [], scalar_prefetch = 0 : i64, scratch_operands = 0 : i64, tpu.core_type = #tpu.core_type<tc>} {
    %c0 = arith.constant 0 : index
    %c0_0 = arith.constant 0 : index
    %0 = vector.load %arg0[%c0, %c0_0] : memref<8x10xf32, #tpu.memory_space<vmem>>, vector<8x10xf32>
    %c0_1 = arith.constant 0 : index
    %c0_2 = arith.constant 0 : index
    %1 = vector.load %arg1[%c0_1, %c0_2] : memref<1x10xf32, #tpu.memory_space<vmem>>, vector<1x10xf32>
    %cst = arith.constant dense<0.000000e+00> : vector<1x8xf32>
    %2 = tpu.matmul %1, %0, %cst {dimension_numbers = #tpu.dot_dimension_numbers<[1], [1], [0], [0], [0, 0, 1, 0], [], []>} : vector<1x10xf32>, vector<8x10xf32>, vector<1x8xf32> -> vector<1x8xf32>
    %c0_3 = arith.constant 0 : index
    %c0_4 = arith.constant 0 : index
    %3 = vector.load %arg2[%c0_3, %c0_4] : memref<1x1xf32, #tpu.memory_space<vmem>>, vector<1x1xf32>
    %4 = vector.broadcast %3 : vector<1x1xf32> to vector<1x8xf32>
    %5 = arith.addf %2, %4 : vector<1x8xf32>
    %cst_5 = arith.constant 5.000000e-01 : f32
    %6 = vector.broadcast %cst_5 : f32 to vector<1x8xf32>
    %7 = arith.mulf %6, %5 : vector<1x8xf32>
    %8 = math.tanh %7 : vector<1x8xf32>
    %cst_6 = arith.constant 5.000000e-01 : f32
    %9 = vector.broadcast %cst_6 : f32 to vector<1x8xf32>
    %10 = arith.mulf %9, %8 : vector<1x8xf32>
    %cst_7 = arith.constant 5.000000e-01 : f32
    %11 = vector.broadcast %cst_7 : f32 to vector<1x8xf32>
    %12 = arith.addf %10, %11 : vector<1x8xf32>
    %c0_8 = arith.constant 0 : index
    %c0_9 = arith.constant 0 : index
    %13 = vector.load %arg3[%c0_8, %c0_9] : memref<1x8xf32, #tpu.memory_space<vmem>>, vector<1x8xf32>
    tpu.vector_store %arg3[%c0_8, %c0_9], %12 {strides = array<i32>} : memref<1x8xf32, #tpu.memory_space<vmem>>, vector<1x8xf32>,
    return
  }
}

</mosaic_0001>

<llo_original>
// kernel: tpu_custom_call.1
$region0: #{tpu_custom_call.1}
  #allocation0 [shape = 'u32[]', space=smem, size = 0x4, offset = 0x4, fixed_abs, tag = 'smem constant byte address 0x4 - core index']
  #allocation1 [shape = 'u32[144,128]{1,0:T(1,128)}', space=vmem, size = 0x12000, scoped, tag = 'internal scratch']
  #allocation2 [shape = 'f32[1,1]{1,0:T(1,128)S(1)}', space=vmem, size = 0x200, scoped, tag = 'scoped memory for tpu_custom_call.1']
  %s0 = inlined_call_operand.hbm [shape: f32[8,10], index: 0, kind: input, shape index: {}]
  %s1 = inlined_call_operand.vmem [shape: f32[1,10], index: 1, kind: input, shape index: {}]
  %s2 = inlined_call_operand.<no memory space> [shape: f32[1,1], index: 2, kind: input, shape index: {}]
  %s3 = inlined_call_operand.hbm [shape: f32[1,8], index: 3, kind: output, shape index: {}]
  %s4 = sld [smem:[#allocation0]]
  $region26: #{tpu_custom_call.1} parent=0
    _
  %s6 = ssub.s32 1, %s4
  %s7 = scalar_select 0, %s6, %s4
  %v8 = vstv %s2
  %9 = vst [vmem:[#allocation2] sm:$0x1] %v8
  $region1: #{tpu_custom_call.1} parent=0
    #allocation3 [shape = 'u8[4096]{0}', space=vmem, size = 0x1000, scoped, tag = 'input window, operand 0, single buffered']
    #allocation4 [shape = 's32[1]{0}', space=sflag, size = 0x4, scoped, tag = 'scoped memory for tpu_custom_call.1']
    #allocation5 [shape = 's32[1]{0}', space=sflag, size = 0x4, scoped, tag = 'scoped memory for tpu_custom_call.1']
    #allocation6 [shape = 'u8[512]{0}', space=vmem, size = 0x400, scoped, tag = 'output window, operand 0, single buffered']
    %10 = vsyncpa [#allocation4], 0
    %11 = vsyncpa [#allocation5], 0
    // Predicated region
    $region2: #{tpu_custom_call.1} parent=1 // pred_check
      _
    $region3: #{tpu_custom_call.1} parent=1 // pred_check_branch
      %13 = sbr.rel (0) target = $region5
    $region4: #{tpu_custom_call.1} parent=1 // pred_region
      %s15 = ssub.s32 128, 128
      %16 = vsyncadd [#allocation4], %s15
      %s18 = sshll.u32 [#allocation3], 4
      %s19 = int_to_ptr.vmem [resolvable:$true] %s18
      %21 = dma.hbm_to_vmem [thread:$0]  %s0, 128, %s19, [#allocation4]
    $region5: #{tpu_custom_call.1} parent=1 // pred_fallthru
      _
    // Predicated region
    $region6: #{tpu_custom_call.1} parent=1 // pred_check
      _
    $region7: #{tpu_custom_call.1} parent=1 // pred_check_branch
      %23 = sbr.rel (0) target = $region9
    $region8: #{tpu_custom_call.1} parent=1 // pred_region
      _
    $region9: #{tpu_custom_call.1} parent=1 // pred_fallthru
      _
    // Predicated region
    $region10: #{tpu_custom_call.1} parent=1 // pred_check
      _
    $region11: #{tpu_custom_call.1} parent=1 // pred_check_branch
      %25 = sbr.rel (0) target = $region13
    $region12: #{tpu_custom_call.1} parent=1 // pred_region
      _
    $region13: #{tpu_custom_call.1} parent=1 // pred_fallthru
      _
    // Predicated region
    $region14: #{tpu_custom_call.1} parent=1 // pred_check
      _
    $region15: #{tpu_custom_call.1} parent=1 // pred_check_branch
      %27 = sbr.rel (0) target = $region17
    $region16: #{tpu_custom_call.1} parent=1 // pred_region
      %28 = dma.done [#allocation4], 128
    $region17: #{tpu_custom_call.1} parent=1 // pred_fallthru
      _
    %v29 = vld [vmem:[#allocation3] sm:$0xff]
    %v30 = vld [vmem:[%s1] sm:$0x1]
    %v31 = vld [vmem:[#allocation2] sm:$0x1]
    %33 = vset.pattern.permute.xlu0 0
    %34 = vperm.xlu0 %33, %v31
    %v35 = vpop.permute.xlu0 %34
    %v37 = vlaneseq
    %v38 = vshrl.u32 %v37, 7
    %v39 = vsub.s32 0, %v38
    %v40 = vrot.slane %v35, %v39
    %vm41 = vcmask 80896
    %v43 = vsel %vm41, %v30, 0
    %v46 = vsel %vm41, %v29, 0
    %48 = vmatprep.subr.mxu0 0.0
    %49 = vmatpush1.xpose.msra.mxu0 %v46
    %50 = vmatprep.subr.mxu0 0.0
    %51 = vmatpush1.xpose.msra.mxu0 0.0
    %52 = vmatprep.subr.mxu0 0.0
    %53 = vmatpush1.xpose.msra.mxu0 0.0
    %54 = vmatprep.subr.mxu0 0.0
    %55 = vmatpush1.xpose.msra.mxu0 0.0
    %56 = vmatprep.subr.mxu0 0.0
    %57 = vmatpush1.xpose.msra.mxu0 0.0
    %58 = vmatprep.subr.mxu0 0.0
    %59 = vmatpush1.xpose.msra.mxu0 0.0
    %60 = vmatprep.subr.mxu0 0.0
    %61 = vmatpush1.xpose.msra.mxu0 0.0
    %62 = vmatprep.subr.mxu0 0.0
    %63 = vmatpush1.xpose.msra.mxu0 0.0
    %64 = vmatprep.subr.mxu0 0.0
    %65 = vmatpush1.xpose.msra.mxu0 0.0
    %66 = vmatprep.subr.mxu0 0.0
    %67 = vmatpush1.xpose.msra.mxu0 0.0
    %68 = vmatprep.subr.mxu0 0.0
    %69 = vmatpush1.xpose.msra.mxu0 0.0
    %70 = vmatprep.subr.mxu0 0.0
    %71 = vmatpush1.xpose.msra.mxu0 0.0
    %72 = vmatprep.subr.mxu0 0.0
    %73 = vmatpush1.xpose.msra.mxu0 0.0
    %74 = vmatprep.subr.mxu0 0.0
    %75 = vmatpush1.xpose.msra.mxu0 0.0
    %76 = vmatprep.subr.mxu0 0.0
    %77 = vmatpush1.xpose.msra.mxu0 0.0
    %78 = vmatprep.subr.mxu0 0.0
    %79 = vmatpush1.xpose.msra.mxu0 0.0
    %80 = vmatprep.subr.mxu0 0.0
    %81 = vmatpush1.xpose.msra.mxu0 0.0
    %82 = vmatprep.subr.mxu0 0.0
    %83 = vmatpush1.xpose.msra.mxu0 0.0
    %84 = vmatprep.subr.mxu0 0.0
    %85 = vmatpush1.xpose.msra.mxu0 0.0
    %86 = vmatprep.subr.mxu0 0.0
    %87 = vmatpush1.xpose.msra.mxu0 0.0
    %88 = vmatprep.subr.mxu0 0.0
    %89 = vmatpush1.xpose.msra.mxu0 0.0
    %90 = vmatprep.subr.mxu0 0.0
    %91 = vmatpush1.xpose.msra.mxu0 0.0
    %92 = vmatprep.subr.mxu0 0.0
    %93 = vmatpush1.xpose.msra.mxu0 0.0
    %94 = vmatprep.subr.mxu0 0.0
    %95 = vmatpush1.xpose.msra.mxu0 0.0
    %96 = vmatprep.subr.mxu0 0.0
    %97 = vmatpush1.xpose.msra.mxu0 0.0
    %98 = vmatprep.subr.mxu0 0.0
    %99 = vmatpush1.xpose.msra.mxu0 0.0
    %100 = vmatprep.subr.mxu0 0.0
    %101 = vmatpush1.xpose.msra.mxu0 0.0
    %102 = vmatprep.subr.mxu0 0.0
    %103 = vmatpush1.xpose.msra.mxu0 0.0
    %104 = vmatprep.subr.mxu0 0.0
    %105 = vmatpush1.xpose.msra.mxu0 0.0
    %106 = vmatprep.subr.mxu0 0.0
    %107 = vmatpush1.xpose.msra.mxu0 0.0
    %108 = vmatprep.subr.mxu0 0.0
    %109 = vmatpush1.xpose.msra.mxu0 0.0
    %110 = vmatprep.subr.mxu0 0.0
    %111 = vmatpush1.xpose.msra.mxu0 0.0
    %112 = vmatprep.mubr.f32.mxu0 0.0
    %113 = vmatmul.mubr.f32.gmra.mrb[0].mxu0 %v43
    %v114 = vpop.f32.mrb[0].mxu0
    %v115 = vadd.f32 %v40, %v114
    %v116 = vpop.f32.mrb[0].mxu0
    %117 = vdwg.mxu0
    %v118 = vmul.f32 %v115, 0.5
    %v119 = vtanh.pop %v118
    %v120 = vmul.f32 %v119, 0.5
    %v121 = vadd.f32 %v120, 0.5
    %vm122 = vcmask 57344
    %123 = vst.msk [vmem:[#allocation6] sm:$0x1] %vm122, %v121
    // Predicated region
    $region18: #{tpu_custom_call.1} parent=1 // pred_check
      _
    $region19: #{tpu_custom_call.1} parent=1 // pred_check_branch
      %125 = sbr.rel (0) target = $region21
    $region20: #{tpu_custom_call.1} parent=1 // pred_region
      %s127 = ssub.s32 16, 16
      %128 = vsyncadd [#allocation5], %s127
      %s130 = sshll.u32 [#allocation6], 4
      %s131 = int_to_ptr.vmem [resolvable:$true] %s130
      %133 = dma.vmem_to_hbm [thread:$0]  %s131, 16, %s3, [#allocation5]
    $region21: #{tpu_custom_call.1} parent=1 // pred_fallthru
      _
    // Predicated region
    $region22: #{tpu_custom_call.1} parent=1 // pred_check
      _
    $region23: #{tpu_custom_call.1} parent=1 // pred_check_branch
      %135 = sbr.rel (0) target = $region25
    $region24: #{tpu_custom_call.1} parent=1 // pred_region
      %136 = dma.done [#allocation5], 16
    $region25: #{tpu_custom_call.1} parent=1 // pred_fallthru
      _
    %137 = vsyncpa [#allocation4], 1
    %138 = vsyncpa [#allocation5], 1

</llo_original>
